<compile_context>
chip_gen: v5e
topology: v5e:2x2
jax: 0.10.0
libtpu: 0.0.40
codegen_flags: <defaults>
</compile_context>

<pallas_src>
import jax
import jax.numpy as jnp
from jax.experimental import pallas as pl
from jax.experimental.pallas import tpu as pltpu


def _mlp_kernel(xT_ref, w1t_ref, b1_ref, w2t_ref, b2_ref, oT_ref):
    # xT_ref : (n_x, block_b)   batch on lanes (lane-dense)
    # w1t_ref: (H,   n_x)       first-layer weight, transposed
    # b1_ref : (H,   1)         broadcast along lanes
    # w2t_ref: (n_y, H)
    # b2_ref : (n_y, 1)
    # oT_ref : (n_y, block_b)
    xT = xT_ref[...]
    h = jnp.dot(w1t_ref[...], xT, preferred_element_type=jnp.float32)
    h = jnp.tanh(h + b1_ref[...])                       # (H, block_b), f32
    y = jnp.dot(w2t_ref[...], h, preferred_element_type=jnp.float32)
    y = y + b2_ref[...]                                  # (n_y, block_b)
    oT_ref[...] = y.astype(oT_ref.dtype)


def neural_output(x, w1, b1, w2, b2, *, block_b=None):
    """Fused two-layer MLP (Linear -> Tanh -> Linear).

    x : (B, n_x);  w1 : (n_x, H);  b1 : (1, H);  w2 : (H, n_y);  b2 : (1, n_y)
    Returns (B, n_y), matching the torch module's forward.
    """
    B, n_x = x.shape
    H = w1.shape[1]
    n_y = w2.shape[1]

    # Batch tile on the lane axis: multiple of 128, default 8192 lanes/step
    # (~256 KiB padded per x/out buffer -> fits comfortably in VMEM on
    # v5e/v6e/v7x with double-buffering), capped to the (rounded-up) batch.
    if block_b is None:
        block_b = 8192
    block_b = max(128, (block_b // 128) * 128)
    block_b = min(block_b, pl.cdiv(B, 128) * 128)
    Bp = pl.cdiv(B, block_b) * block_b

    # Lane-dense layout: batch -> lanes.  (Layout plumbing stays in the
    # wrapper; the transposes are tiny, one-time XLA ops.)
    xT = x.T                                   # (n_x, B)
    if Bp != B:
        xT = jnp.pad(xT, ((0, 0), (0, Bp - B)))
    w1t = w1.T                                 # (H, n_x)
    w2t = w2.T                                 # (n_y, H)
    b1c = b1.reshape(H, 1)                     # (H, 1)
    b2c = b2.reshape(n_y, 1)                   # (n_y, 1)

    grid = (Bp // block_b,)
    outT = pl.pallas_call(
        _mlp_kernel,
        out_shape=jax.ShapeDtypeStruct((n_y, Bp), x.dtype),
        grid_spec=pltpu.PrefetchScalarGridSpec(
            num_scalar_prefetch=0,
            grid=grid,
            in_specs=[
                pl.BlockSpec((n_x, block_b), lambda i: (0, i)),  # xT tile
                pl.BlockSpec((H, n_x), lambda i: (0, 0)),        # W1^T (resident)
                pl.BlockSpec((H, 1), lambda i: (0, 0)),          # b1
                pl.BlockSpec((n_y, H), lambda i: (0, 0)),        # W2^T (resident)
                pl.BlockSpec((n_y, 1), lambda i: (0, 0)),        # b2
            ],
            out_specs=pl.BlockSpec((n_y, block_b), lambda i: (0, i)),
        ),
        compiler_params=pltpu.CompilerParams(
            # Batch grid axis is embarrassingly parallel -> shards across
            # v7x's 2 TensorCores; harmless on v5e/v6e.
            dimension_semantics=("parallel",),
        ),
    )(xT, w1t, b1c, w2t, b2c)

    return outT[:, :B].T                       # back to (B, n_y)


def init_params(key, n_x, n_y, hidden_size=16, dtype=jnp.float32):
    """Deterministic init mimicking torch.nn.Linear default (U(+-1/sqrt(fan_in)))."""
    k1, k2, k3, k4 = jax.random.split(key, 4)
    bound1 = 1.0 / (n_x ** 0.5)
    bound2 = 1.0 / (hidden_size ** 0.5)
    w1 = jax.random.uniform(k1, (n_x, hidden_size), dtype, -bound1, bound1)
    b1 = jax.random.uniform(k2, (1, hidden_size), dtype, -bound1, bound1)
    w2 = jax.random.uniform(k3, (hidden_size, n_y), dtype, -bound2, bound2)
    b2 = jax.random.uniform(k4, (1, n_y), dtype, -bound2, bound2)
    return w1, b1, w2, b2


if __name__ == "__main__":
    # Shapes consistent with NeuralOutput: state dim n_x=4, output n_y=3,
    # hidden=16, batch of 8 time samples.
    B, n_x, n_y, hidden = 8, 4, 3, 16

    key = jax.random.PRNGKey(0)
    kx, kp = jax.random.split(key)
    x = jax.random.normal(kx, (B, n_x), jnp.float32)
    w1, b1, w2, b2 = init_params(kp, n_x, n_y, hidden)

    y = neural_output(x, w1, b1, w2, b2)
    y = jax.block_until_ready(y)

    # Pure-JAX reference check.
    ref = jnp.tanh(x @ w1 + b1) @ w2 + b2
    assert y.shape == (B, n_y)
    assert jnp.allclose(y, ref, atol=1e-5, rtol=1e-5)

    print("KERNEL_OK")
</pallas_src>

<mosaic_0001>
module attributes {stable_mosaic.version = 11 : i64} {
  func.func @_mlp_kernel(%arg0: i32, %arg1: memref<4x128xf32, #tpu.memory_space<vmem>>, %arg2: memref<16x4xf32, #tpu.memory_space<vmem>>, %arg3: memref<16x1xf32, #tpu.memory_space<vmem>>, %arg4: memref<3x16xf32, #tpu.memory_space<vmem>>, %arg5: memref<3x1xf32, #tpu.memory_space<vmem>>, %arg6: memref<3x128xf32, #tpu.memory_space<vmem>>) attributes {dimension_semantics = [#tpu.dimension_semantics<parallel>], iteration_bounds = array<i64: 1>, scalar_prefetch = 0 : i64, scratch_operands = 0 : i64, tpu.core_type = #tpu.core_type<tc>, window_params = [{transform_indices = @transform_0, window_bounds = array<i64: 4, 128>}, {pipeline_mode = #tpu.pipeline_mode<synchronous>, transform_indices = @transform_1, window_bounds = array<i64: 16, 4>}, {pipeline_mode = #tpu.pipeline_mode<synchronous>, transform_indices = @transform_2, window_bounds = array<i64: 16, 1>}, {pipeline_mode = #tpu.pipeline_mode<synchronous>, transform_indices = @transform_3, window_bounds = array<i64: 3, 16>}, {pipeline_mode = #tpu.pipeline_mode<synchronous>, transform_indices = @transform_4, window_bounds = array<i64: 3, 1>}, {transform_indices = @transform_5, window_bounds = array<i64: 3, 128>}]} {
    %c0 = arith.constant 0 : index
    %c0_0 = arith.constant 0 : index
    %0 = vector.load %arg1[%c0, %c0_0] : memref<4x128xf32, #tpu.memory_space<vmem>>, vector<4x128xf32>
    %c0_1 = arith.constant 0 : index
    %c0_2 = arith.constant 0 : index
    %1 = vector.load %arg2[%c0_1, %c0_2] : memref<16x4xf32, #tpu.memory_space<vmem>>, vector<16x4xf32>
    %cst = arith.constant dense<0.000000e+00> : vector<16x128xf32>
    %2 = tpu.matmul %1, %0, %cst {dimension_numbers = #tpu.dot_dimension_numbers<[1], [0], [0], [1], [0, 0, 1, 1], [], []>} : vector<16x4xf32>, vector<4x128xf32>, vector<16x128xf32> -> vector<16x128xf32>
    %c0_3 = arith.constant 0 : index
    %c0_4 = arith.constant 0 : index
    %3 = vector.load %arg3[%c0_3, %c0_4] : memref<16x1xf32, #tpu.memory_space<vmem>>, vector<16x1xf32>
    %4 = vector.broadcast %3 : vector<16x1xf32> to vector<16x128xf32>
    %5 = arith.addf %2, %4 : vector<16x128xf32>
    %6 = math.tanh %5 : vector<16x128xf32>
    %c0_5 = arith.constant 0 : index
    %c0_6 = arith.constant 0 : index
    %7 = vector.load %arg4[%c0_5, %c0_6] : memref<3x16xf32, #tpu.memory_space<vmem>>, vector<3x16xf32>
    %cst_7 = arith.constant dense<0.000000e+00> : vector<3x128xf32>
    %8 = tpu.matmul %7, %6, %cst_7 {dimension_numbers = #tpu.dot_dimension_numbers<[1], [0], [0], [1], [0, 0, 1, 1], [], []>} : vector<3x16xf32>, vector<16x128xf32>, vector<3x128xf32> -> vector<3x128xf32>
    %c0_8 = arith.constant 0 : index
    %c0_9 = arith.constant 0 : index
    %9 = vector.load %arg5[%c0_8, %c0_9] : memref<3x1xf32, #tpu.memory_space<vmem>>, vector<3x1xf32>
    %10 = vector.broadcast %9 : vector<3x1xf32> to vector<3x128xf32>
    %11 = arith.addf %8, %10 : vector<3x128xf32>
    %c0_10 = arith.constant 0 : index
    %c0_11 = arith.constant 0 : index
    %12 = vector.load %arg6[%c0_10, %c0_11] : memref<3x128xf32, #tpu.memory_space<vmem>>, vector<3x128xf32>
    tpu.vector_store %arg6[%c0_10, %c0_11], %11 {strides = array<i32>} : memref<3x128xf32, #tpu.memory_space<vmem>>, vector<3x128xf32>,
    return
  }
  func.func @transform_0(%arg0: i32) -> (i32, i32) {
    %c0_i32 = arith.constant 0 : i32
    %c0_i32_0 = arith.constant 0 : i32
    return %c0_i32, %arg0 : i32, i32
  }
  func.func @transform_1(%arg0: i32) -> (i32, i32) {
    %c0_i32 = arith.constant 0 : i32
    %c0_i32_0 = arith.constant 0 : i32
    %c0_i32_1 = arith.constant 0 : i32
    return %c0_i32, %c0_i32_0 : i32, i32
  }
  func.func @transform_2(%arg0: i32) -> (i32, i32) {
    %c0_i32 = arith.constant 0 : i32
    %c0_i32_0 = arith.constant 0 : i32
    %c0_i32_1 = arith.constant 0 : i32
    return %c0_i32, %c0_i32_0 : i32, i32
  }
  func.func @transform_3(%arg0: i32) -> (i32, i32) {
    %c0_i32 = arith.constant 0 : i32
    %c0_i32_0 = arith.constant 0 : i32
    %c0_i32_1 = arith.constant 0 : i32
    return %c0_i32, %c0_i32_0 : i32, i32
  }
  func.func @transform_4(%arg0: i32) -> (i32, i32) {
    %c0_i32 = arith.constant 0 : i32
    %c0_i32_0 = arith.constant 0 : i32
    %c0_i32_1 = arith.constant 0 : i32
    return %c0_i32, %c0_i32_0 : i32, i32
  }
  func.func @transform_5(%arg0: i32) -> (i32, i32) {
    %c0_i32 = arith.constant 0 : i32
    %c0_i32_0 = arith.constant 0 : i32
    return %c0_i32, %arg0 : i32, i32
  }
}

</mosaic_0001>

<llo_original>
// kernel: tpu_custom_call.1
$region0: #{tpu_custom_call.1}
  #allocation0 [shape = 'u32[]', space=smem, size = 0x4, offset = 0x4, fixed_abs, tag = 'smem constant byte address 0x4 - core index']
  #allocation1 [shape = 'u32[72,128]{1,0:T(1,128)}', space=vmem, size = 0x9000, scoped, tag = 'internal scratch']
  %s0 = inlined_call_operand.vmem [shape: f32[4,128], index: 0, kind: input, shape index: {}]
  %s1 = inlined_call_operand.vmem [shape: f32[16,4], index: 1, kind: input, shape index: {}]
  %s2 = inlined_call_operand.vmem [shape: f32[16,1], index: 2, kind: input, shape index: {}]
  %s3 = inlined_call_operand.vmem [shape: f32[3,16], index: 3, kind: input, shape index: {}]
  %s4 = inlined_call_operand.vmem [shape: f32[3,1], index: 4, kind: input, shape index: {}]
  %s5 = inlined_call_operand.hbm [shape: f32[3,128], index: 5, kind: output, shape index: {}]
  %s6 = sld [smem:[#allocation0]]
  $region30: #{tpu_custom_call.1} parent=0
    _
  %s8 = ssub.s32 1, %s6
  %s9 = scalar_select 0, %s8, %s6
  $region1: #{tpu_custom_call.1} parent=0
    #allocation2 [shape = 'u8[2048]{0}', space=vmem, size = 0x800, scoped, tag = 'output window, operand 0, single buffered']
    #allocation3 [shape = 's32[1]{0}', space=sflag, size = 0x4, scoped, tag = 'scoped memory for tpu_custom_call.1']
    %10 = vsyncpa [#allocation3], 0
    // Predicated region
    $region2: #{tpu_custom_call.1} parent=1 // pred_check
      _
    $region3: #{tpu_custom_call.1} parent=1 // pred_check_branch
      %12 = sbr.rel (0) target = $region5
    $region4: #{tpu_custom_call.1} parent=1 // pred_region
      _
    $region5: #{tpu_custom_call.1} parent=1 // pred_fallthru
      _
    // Predicated region
    $region6: #{tpu_custom_call.1} parent=1 // pred_check
      _
    $region7: #{tpu_custom_call.1} parent=1 // pred_check_branch
      %14 = sbr.rel (0) target = $region9
    $region8: #{tpu_custom_call.1} parent=1 // pred_region
      _
    $region9: #{tpu_custom_call.1} parent=1 // pred_fallthru
      _
    // Predicated region
    $region10: #{tpu_custom_call.1} parent=1 // pred_check
      _
    $region11: #{tpu_custom_call.1} parent=1 // pred_check_branch
      %16 = sbr.rel (0) target = $region13
    $region12: #{tpu_custom_call.1} parent=1 // pred_region
      _
    $region13: #{tpu_custom_call.1} parent=1 // pred_fallthru
      _
    // Predicated region
    $region14: #{tpu_custom_call.1} parent=1 // pred_check
      _
    $region15: #{tpu_custom_call.1} parent=1 // pred_check_branch
      %18 = sbr.rel (0) target = $region17
    $region16: #{tpu_custom_call.1} parent=1 // pred_region
      _
    $region17: #{tpu_custom_call.1} parent=1 // pred_fallthru
      _
    // Predicated region
    $region18: #{tpu_custom_call.1} parent=1 // pred_check
      _
    $region19: #{tpu_custom_call.1} parent=1 // pred_check_branch
      %20 = sbr.rel (0) target = $region21
    $region20: #{tpu_custom_call.1} parent=1 // pred_region
      _
    $region21: #{tpu_custom_call.1} parent=1 // pred_fallthru
      _
    %v21 = vld [vmem:[%s0] sm:$0xf]
    %v22 = vld [vmem:[%s1] sm:$0xff]
    %v23 = vld [vmem:[%s1 + $0x8] sm:$0xff]
    %v24 = vld [vmem:[%s2] sm:$0xff]
    %v25 = vld [vmem:[%s2 + $0x8] sm:$0xff]
    %27 = vset.pattern.permute.xlu0 0
    %28 = vperm.xlu0 %27, %v24
    %v29 = vpop.permute.xlu0 %28
    %32 = vset.pattern.permute.xlu0 0
    %33 = vperm.xlu0 %32, %v25
    %v34 = vpop.permute.xlu0 %33
    %vm36 = vcmask 31744
    %v38 = vsel %vm36, %v22, 0
    %v41 = vsel %vm36, %v23, 0
    %vm43 = vcmask 1043456
    %v45 = vsel %vm43, %v21, 0
    %47 = vmatpush.msra.mxu0 0.0
    %48 = vmatpush.msra.mxu0 0.0
    %49 = vmatpush.msra.mxu0 0.0
    %50 = vmatpush.msra.mxu0 0.0
    %51 = vmatpush.msra.mxu0 0.0
    %52 = vmatpush.msra.mxu0 0.0
    %53 = vmatpush.msra.mxu0 0.0
    %54 = vmatpush.msra.mxu0 0.0
    %55 = vmatpush.msra.mxu0 0.0
    %56 = vmatpush.msra.mxu0 0.0
    %57 = vmatpush.msra.mxu0 0.0
    %58 = vmatpush.msra.mxu0 0.0
    %59 = vmatpush.msra.mxu0 0.0
    %60 = vmatpush.msra.mxu0 0.0
    %61 = vmatpush.msra.mxu0 0.0
    %62 = vmatpush.msra.mxu0 %v45
    %63 = vmatmul.f32.gmra.mxu0 %v38
    %v64 = vpop.f32.mrf.mxu0
    %v65 = vadd.f32 %v29, %v64
    %66 = vmatmul.f32.gmra.mxu0 %v41
    %v67 = vpop.f32.mrf.mxu0
    %v68 = vadd.f32 %v34, %v67
    %69 = vdwg.mxu0
    %v70 = vtanh.pop %v65
    %v71 = vtanh.pop %v68
    %v72 = vld [vmem:[%s3] sm:$0x7]
    %v73 = vld [vmem:[%s4] sm:$0x7]
    %75 = vset.pattern.permute.xlu0 0
    %76 = vperm.xlu0 %75, %v73
    %v77 = vpop.permute.xlu0 %76
    %vm79 = vcmask 130048
    %v81 = vsel %vm79, %v72, 0
    %83 = vmatpush.msra.mxu0 0.0
    %84 = vmatpush.msra.mxu0 0.0
    %85 = vmatpush.msra.mxu0 0.0
    %86 = vmatpush.msra.mxu0 0.0
    %87 = vmatpush.msra.mxu0 0.0
    %88 = vmatpush.msra.mxu0 0.0
    %89 = vmatpush.msra.mxu0 0.0
    %90 = vmatpush.msra.mxu0 0.0
    %91 = vmatpush.msra.mxu0 0.0
    %92 = vmatpush.msra.mxu0 0.0
    %93 = vmatpush.msra.mxu0 0.0
    %94 = vmatpush.msra.mxu0 0.0
    %95 = vmatpush.msra.mxu0 0.0
    %96 = vmatpush.msra.mxu0 0.0
    %97 = vmatpush.msra.mxu0 %v71
    %98 = vmatpush.msra.mxu0 %v70
    %99 = vmatmul.f32.gmra.mxu0 %v81
    %v100 = vpop.f32.mrf.mxu0
    %v101 = vadd.f32 %v77, %v100
    %102 = vdwg.mxu0
    %103 = vst [vmem:[#allocation2] sm:$0x7] %v101
    // Predicated region
    $region22: #{tpu_custom_call.1} parent=1 // pred_check
      _
    $region23: #{tpu_custom_call.1} parent=1 // pred_check_branch
      %105 = sbr.rel (0) target = $region25
    $region24: #{tpu_custom_call.1} parent=1 // pred_region
      %107 = vsyncadd [#allocation3], 0
      %s109 = sshll.u32 [#allocation2], 4
      %s110 = int_to_ptr.vmem [resolvable:$true] %s109
      %s111 = sshll.u32 %s5, 4
      %s112 = int_to_ptr.hbm [resolvable:$true] %s111
      %114 = dma.vmem_to_hbm [thread:$0]  %s110, 64, %s112, [#allocation3]
    $region25: #{tpu_custom_call.1} parent=1 // pred_fallthru
      _
    // Predicated region
    $region26: #{tpu_custom_call.1} parent=1 // pred_check
      _
    $region27: #{tpu_custom_call.1} parent=1 // pred_check_branch
      %116 = sbr.rel (0) target = $region29
    $region28: #{tpu_custom_call.1} parent=1 // pred_region
      %118 = dma.done [#allocation3], 64
    $region29: #{tpu_custom_call.1} parent=1 // pred_fallthru
      _
    %119 = vsyncpa [#allocation3], 1

</llo_original>
